<compile_context>
chip_gen: v7x
topology: tpu7x:2x2x1
jax: 0.10.0
libtpu: 0.0.40
codegen_flags: <defaults>
</compile_context>

<pallas_src>
import jax
import jax.numpy as jnp
import numpy as np
from jax.experimental import pallas as pl
from jax.experimental.pallas import tpu as pltpu

MAX_VAL = 4.0e9                     # max_val in the PyTorch module
_INV_MAX_VAL = 1.0 / MAX_VAL        # folded at trace time (≤ ~1 ULP vs true div)

_MAX_BLOCK_BYTES = 4 * 1024 * 1024      # per-block VMEM buffer cap (4 MiB)
_VMEM_LIMIT_BYTES = 48 * 1024 * 1024    # headroom on all of v5e/v6e/v7x
_PAD_VALUE = 20.0                       # pass-through regime; only used in the
                                        # rare ragged fallback and sliced off


def _normalize01_kernel(x_ref, o_ref):
    # x_ref / o_ref: (block_rows, cols) tiles in VMEM, original dtype.
    x = x_ref[...].astype(jnp.float32)                       # free VPU cast
    y = jnp.where(x <= jnp.float32(10.0), jnp.float32(1.0), x)
    y = jnp.minimum(y, jnp.float32(MAX_VAL))
    o_ref[...] = (y * jnp.float32(_INV_MAX_VAL)).astype(o_ref.dtype)


def _choose_layout(total, sub):
    """Pick (rows, cols) with rows*cols == total, cols % 128 == 0, preferring
    rows % sub == 0 (perfect sublane tiling). Returns (None, None) if total is
    not divisible by 128."""
    divisors = [c for c in (1024, 512, 256, 128) if total % c == 0]
    if not divisors:
        return None, None
    for cols in divisors:
        rows = total // cols
        if rows % sub == 0:
            return rows, cols
    cols = divisors[0]
    return total // cols, cols


def normalize01_forward(result_noisy, *, donate_input=False):
    """Element-wise Normalize01 forward.  Accepts any shape; returns same shape."""
    orig_shape = result_noisy.shape

    # torch's division returns float for integer inputs; mirror that.
    if not jnp.issubdtype(result_noisy.dtype, jnp.floating):
        result_noisy = result_noisy.astype(jnp.float32)
    work_dtype = result_noisy.dtype
    itemsize = jnp.dtype(work_dtype).itemsize
    sub = max(8, 32 // itemsize)          # sublane multiple: 8 (32-bit), 16 (16-bit)

    x = result_noisy.reshape(-1)
    total = x.shape[0]
    if total == 0:
        return x.reshape(orig_shape)

    rows, cols = _choose_layout(total, sub)
    sliced = False
    if rows is None:
        # Ragged fallback (total % 128 != 0): one pad pass + one slice pass.
        cols = 128
        rows = -(-total // cols)
        rows = -(-rows // sub) * sub
        pad = rows * cols - total
        x = jnp.pad(x, (0, pad), constant_values=_PAD_VALUE)
        sliced = True

    x2 = x.reshape(rows, cols)            # free: contiguous reshape

    # Block height: multiple of the sublane packing, capped so each VMEM buffer
    # stays <= _MAX_BLOCK_BYTES; aim for >= 2 grid steps (megacore on v7x).
    max_block_rows = max(sub, (_MAX_BLOCK_BYTES // (cols * itemsize)) // sub * sub)
    if rows <= sub:
        block_rows = rows                 # single full-array block (tiny input)
    else:
        block_rows = min(max_block_rows, max(sub, (rows // 2) // sub * sub))
    num_blocks = -(-rows // block_rows)

    spec = pl.BlockSpec((block_rows, cols), lambda i: (i, 0))

    kwargs = {}
    if donate_input and not sliced:
        # Mirrors the in-place PyTorch semantics; only beneficial when the
        # caller actually donates `result_noisy` (otherwise XLA copies).
        kwargs["input_output_aliases"] = {0: 0}

    out2 = pl.pallas_call(
        _normalize01_kernel,
        out_shape=jax.ShapeDtypeStruct((rows, cols), work_dtype),
        grid_spec=pltpu.PrefetchScalarGridSpec(
            num_scalar_prefetch=0,
            grid=(num_blocks,),
            in_specs=[spec],
            out_specs=spec,
        ),
        compiler_params=pltpu.CompilerParams(
            dimension_semantics=("parallel",),
            vmem_limit_bytes=_VMEM_LIMIT_BYTES),
        **kwargs,
    )(x2)

    out = out2.reshape(-1)
    if sliced:
        out = out[:total]
    return out.reshape(orig_shape)


def _reference(result_noisy):
    """Pure-JAX reference with identical semantics (true division)."""
    x = result_noisy.astype(jnp.float32)
    y = jnp.where(x <= 10.0, 1.0, x)
    y = jnp.where(y >= MAX_VAL, MAX_VAL, y)
    out = y / MAX_VAL
    if jnp.issubdtype(result_noisy.dtype, jnp.floating):
        out = out.astype(result_noisy.dtype)
    return out


if __name__ == "__main__":
    # Small deterministic shapes consistent with the module's forward
    # (it is element-wise over a batched image tensor).
    Nbatch, C, H, W = 2, 4, 16, 16
    shape = (Nbatch, C, H, W)

    key = jax.random.PRNGKey(0)
    k_big, k_small, k_mask = jax.random.split(key, 3)

    # Values spanning all three regimes: <= 10, mid-range, and >= 4e9.
    big = jax.random.uniform(k_big, shape, minval=0.0, maxval=8.0e9,
                             dtype=jnp.float32)
    small = jax.random.uniform(k_small, shape, minval=0.0, maxval=20.0,
                               dtype=jnp.float32)
    mask = jax.random.bernoulli(k_mask, 0.3, shape)
    result_noisy = jnp.where(mask, small, big).astype(jnp.float32)

    # f32 path
    out = jax.block_until_ready(normalize01_forward(result_noisy))
    ref = _reference(result_noisy)
    np.testing.assert_allclose(np.asarray(out), np.asarray(ref),
                               rtol=1e-5, atol=1e-12)
    assert out.shape == shape and out.dtype == result_noisy.dtype

    # bf16 path (native 16-bit streaming, no wrapper casts)
    x_bf16 = result_noisy.astype(jnp.bfloat16)
    out_bf16 = jax.block_until_ready(normalize01_forward(x_bf16))
    ref_bf16 = _reference(x_bf16)
    np.testing.assert_allclose(np.asarray(out_bf16.astype(jnp.float32)),
                               np.asarray(ref_bf16.astype(jnp.float32)),
                               rtol=2e-2, atol=1e-12)
    assert out_bf16.dtype == jnp.bfloat16

    print("KERNEL_OK")
</pallas_src>

<mosaic_0001>
module attributes {stable_mosaic.version = 11 : i64} {
  func.func @_normalize01_kernel(%arg0: i32, %arg1: memref<8x256xf32, #tpu.memory_space<vmem>>, %arg2: memref<8x256xf32, #tpu.memory_space<vmem>>) attributes {dimension_semantics = [#tpu.dimension_semantics<parallel>], iteration_bounds = array<i64: 1>, scalar_prefetch = 0 : i64, scratch_operands = 0 : i64, tpu.core_type = #tpu.core_type<tc>, window_params = [{transform_indices = @transform_0, window_bounds = array<i64: 8, 256>}, {transform_indices = @transform_1, window_bounds = array<i64: 8, 256>}]} {
    %c0 = arith.constant 0 : index
    %c0_0 = arith.constant 0 : index
    %0 = vector.load %arg1[%c0, %c0_0] : memref<8x256xf32, #tpu.memory_space<vmem>>, vector<8x256xf32>
    %cst = arith.constant 1.000000e+01 : f32
    %1 = vector.broadcast %cst : f32 to vector<8x256xf32>
    %2 = arith.cmpf ole, %0, %1 : vector<8x256xf32>
    %cst_1 = arith.constant 1.000000e+00 : f32
    %3 = vector.broadcast %cst_1 : f32 to vector<8x256xf32>
    %4 = arith.select %2, %3, %0 : vector<8x256xi1>, vector<8x256xf32>
    %cst_2 = arith.constant 4.000000e+09 : f32
    %5 = vector.broadcast %cst_2 : f32 to vector<8x256xf32>
    %6 = arith.minimumf %4, %5 : vector<8x256xf32>
    %cst_3 = arith.constant 2.500000e-10 : f32
    %7 = vector.broadcast %cst_3 : f32 to vector<8x256xf32>
    %8 = arith.mulf %6, %7 : vector<8x256xf32>
    %c0_4 = arith.constant 0 : index
    %c0_5 = arith.constant 0 : index
    %9 = vector.load %arg2[%c0_4, %c0_5] : memref<8x256xf32, #tpu.memory_space<vmem>>, vector<8x256xf32>
    tpu.vector_store %arg2[%c0_4, %c0_5], %8 {strides = array<i32>} : memref<8x256xf32, #tpu.memory_space<vmem>>, vector<8x256xf32>,
    return
  }
  func.func @transform_0(%arg0: i32) -> (i32, i32) {
    %c0_i32 = arith.constant 0 : i32
    %c0_i32_0 = arith.constant 0 : i32
    return %arg0, %c0_i32 : i32, i32
  }
  func.func @transform_1(%arg0: i32) -> (i32, i32) {
    %c0_i32 = arith.constant 0 : i32
    %c0_i32_0 = arith.constant 0 : i32
    return %arg0, %c0_i32 : i32, i32
  }
}

</mosaic_0001>

<llo_original>
// kernel: tpu_custom_call.1
$region0: #{tpu_custom_call.1}
  #allocation0 [shape = 'u32[]', space=smem, size = 0x4, offset = 0x4, fixed_abs, tag = 'smem constant byte address 0x4 - core index']
  #allocation1 [shape = 'u32[144,128]{1,0:T(1,128)}', space=vmem, size = 0x12000, scoped, tag = 'internal scratch']
  %s0 = inlined_call_operand.hbm [shape: f32[8,256], index: 0, kind: input, shape index: {}]
  %s1 = inlined_call_operand.hbm [shape: f32[8,256], index: 1, kind: output, shape index: {}]
  %s2 = sld [smem:[#allocation0]]
  $region18: #{tpu_custom_call.1} parent=0
    _
  %s4 = ssub.s32 1, %s2
  %s5 = scalar_select 0, %s4, %s2
  $region1: #{tpu_custom_call.1} parent=0
    #allocation2 [shape = 'u8[8192]{0}', space=vmem, size = 0x2000, scoped, tag = 'input window, operand 0, single buffered']
    #allocation3 [shape = 's32[1]{0}', space=sflag, size = 0x4, scoped, tag = 'scoped memory for tpu_custom_call.1']
    #allocation4 [shape = 's32[1]{0}', space=sflag, size = 0x4, scoped, tag = 'scoped memory for tpu_custom_call.1']
    #allocation5 [shape = 'u8[8192]{0}', space=vmem, size = 0x2000, scoped, tag = 'output window, operand 0, single buffered']
    %6 = vsyncpa [#allocation3], 0
    %7 = vsyncpa [#allocation4], 0
    // Predicated region
    $region2: #{tpu_custom_call.1} parent=1 // pred_check
      _
    $region3: #{tpu_custom_call.1} parent=1 // pred_check_branch
      %9 = sbr.rel (0) target = $region5
    $region4: #{tpu_custom_call.1} parent=1 // pred_region
      %s11 = ssub.s32 256, 256
      %12 = vsyncadd [#allocation3], %s11
      %s14 = sshll.u32 [#allocation2], 4
      %s15 = int_to_ptr.vmem [resolvable:$true] %s14
      %17 = dma.hbm_to_vmem [thread:$0]  %s0, 256, %s15, [#allocation3]
    $region5: #{tpu_custom_call.1} parent=1 // pred_fallthru
      _
    // Predicated region
    $region6: #{tpu_custom_call.1} parent=1 // pred_check
      _
    $region7: #{tpu_custom_call.1} parent=1 // pred_check_branch
      %19 = sbr.rel (0) target = $region9
    $region8: #{tpu_custom_call.1} parent=1 // pred_region
      %20 = dma.done [#allocation3], 256
    $region9: #{tpu_custom_call.1} parent=1 // pred_fallthru
      _
    %v21 = vld [vmem:[#allocation2] sm:$0xff]
    %v22 = vld [vmem:[#allocation2 + $0x8] sm:$0xff]
    %vm23 = vcmp.le.f32.partialorder %v21, 10.0
    %vm24 = vcmp.le.f32.partialorder %v22, 10.0
    %v25 = vsel %vm23, 1.0, %v21
    %v26 = vsel %vm24, 1.0, %v22
    %v27 = vmin.f32 %v25, 4e+09
    %v28 = vmin.f32 %v26, 4e+09
    %v29 = vmul.f32 %v27, 2.5e-10
    %v30 = vmul.f32 %v28, 2.5e-10
    %31 = vst [vmem:[#allocation5] sm:$0xff] %v29
    %32 = vst [vmem:[#allocation5 + $0x8] sm:$0xff] %v30
    // Predicated region
    $region10: #{tpu_custom_call.1} parent=1 // pred_check
      _
    $region11: #{tpu_custom_call.1} parent=1 // pred_check_branch
      %34 = sbr.rel (0) target = $region13
    $region12: #{tpu_custom_call.1} parent=1 // pred_region
      %s36 = ssub.s32 256, 256
      %37 = vsyncadd [#allocation4], %s36
      %s39 = sshll.u32 [#allocation5], 4
      %s40 = int_to_ptr.vmem [resolvable:$true] %s39
      %42 = dma.vmem_to_hbm [thread:$0]  %s40, 256, %s1, [#allocation4]
    $region13: #{tpu_custom_call.1} parent=1 // pred_fallthru
      _
    // Predicated region
    $region14: #{tpu_custom_call.1} parent=1 // pred_check
      _
    $region15: #{tpu_custom_call.1} parent=1 // pred_check_branch
      %44 = sbr.rel (0) target = $region17
    $region16: #{tpu_custom_call.1} parent=1 // pred_region
      %45 = dma.done [#allocation4], 256
    $region17: #{tpu_custom_call.1} parent=1 // pred_fallthru
      _
    %46 = vsyncpa [#allocation3], 1
    %47 = vsyncpa [#allocation4], 1

</llo_original>
